<compile_context>
chip_gen: v7x
topology: tpu7x:2x2x1
jax: 0.10.0
libtpu: 0.0.40
codegen_flags: <defaults>
</compile_context>

<pallas_src>
import jax
import jax.numpy as jnp
from jax.experimental import pallas as pl
from jax.experimental.pallas import tpu as pltpu

_LANES = 128
_SUBLANES = 8
_CHUNK_ROWS = 64              # inner register-resident chunk (64x128 f32 = 8 vregs)
_MAX_BLOCK_ROWS = 2048        # HBM tile rows: 2048x128 f32 = 1 MiB / input / buffer
_MIN_PALLAS_ELEMENTS = 1 << 20  # below this, plain JAX beats kernel overhead


def _clamped_loglik(p, t, hard_labels):
    """t*log(p) + (1-t)*log(1-p) with each log clamped at -100 (PyTorch BCELoss).

    Clamp is applied BEFORE the multiply/select so (p=1, t=1) padding elements
    contribute exactly 0.  Returned value is the (non-negated) log-likelihood;
    the -1/count scale is applied at the end.
    """
    if hard_labels:
        # Targets known to be 0/1: select the argument, one transcendental.
        x = jnp.where(t >= 0.5, p, 1.0 - p)
        return jnp.maximum(jnp.log(x), -100.0)
    log_p = jnp.maximum(jnp.log(p), -100.0)
    log_1mp = jnp.maximum(jnp.log1p(-p), -100.0)
    # == t*log_p + (1-t)*log_1mp with one fewer mul/sub per element.
    return log_1mp + t * (log_p - log_1mp)


def _make_single_block_kernel(scale, hard_labels):
    """Whole (padded) tensor fits one VMEM block: direct reduce."""
    def kernel(pred_ref, tgt_ref, out_ref):
        p = pred_ref[...].astype(jnp.float32)
        t = tgt_ref[...].astype(jnp.float32)
        ll = _clamped_loglik(p, t, hard_labels)
        out_ref[...] = (jnp.sum(ll) * scale).reshape(1, 1)
    return kernel


def _make_streaming_kernel(br, tail_rows, scale, hard_labels):
    """Grid-streamed reduction over (br, 128) blocks with a partial tail block."""
    n_chunks_full = br // _CHUNK_ROWS
    n_chunks_tail = pl.cdiv(tail_rows, _CHUNK_ROWS)

    def kernel(pred_ref, tgt_ref, out_ref, acc_ref):
        j = pl.program_id(0)
        last = pl.num_programs(0) - 1

        @pl.when(j == 0)
        def _init():
            acc_ref[...] = jnp.zeros_like(acc_ref)

        def accumulate(n_chunks, row_limit):
            # Inner chunk loop keeps the elementwise chain in vregs (no
            # (br,128) VMEM temporaries / extra vld+vst traffic).
            def chunk_body(c, carry):
                r0 = pl.multiple_of(c * _CHUNK_ROWS, _CHUNK_ROWS)
                p = pred_ref[pl.ds(r0, _CHUNK_ROWS), :].astype(jnp.float32)
                t = tgt_ref[pl.ds(r0, _CHUNK_ROWS), :].astype(jnp.float32)
                ll = _clamped_loglik(p, t, hard_labels)
                if row_limit is not None:
                    # Mask rows beyond the valid data of the partial last
                    # block.  `where` selects, so garbage/NaN is discarded.
                    rid = jax.lax.broadcasted_iota(jnp.int32, ll.shape, 0) + r0
                    ll = jnp.where(rid < row_limit, ll, 0.0)
                folded = ll.reshape(
                    _CHUNK_ROWS // _SUBLANES, _SUBLANES, _LANES).sum(axis=0)
                return carry + folded

            carry = jax.lax.fori_loop(
                0, n_chunks, chunk_body,
                jnp.zeros((_SUBLANES, _LANES), jnp.float32))
            acc_ref[...] += carry

        if tail_rows == br:
            accumulate(n_chunks_full, None)       # rows divide evenly: no mask
        else:
            @pl.when(j != last)
            def _full():
                accumulate(n_chunks_full, None)   # hot path: mask-free

            @pl.when(j == last)
            def _tail():
                accumulate(n_chunks_tail, tail_rows)

        @pl.when(j == last)
        def _finish():
            # Single cross-lane/sublane reduce; negation folded into `scale`.
            out_ref[...] = (jnp.sum(acc_ref[...]) * scale).reshape(1, 1)

    return kernel


def _bce_mean_reference(pred, target):
    """Plain-JAX BCELoss(mean) with PyTorch's -100 log clamp."""
    p = pred.astype(jnp.float32)
    t = target.astype(jnp.float32)
    log_p = jnp.maximum(jnp.log(p), -100.0)
    log_1mp = jnp.maximum(jnp.log1p(-p), -100.0)
    return -jnp.mean(t * log_p + (1.0 - t) * log_1mp)


def adversarial_loss(pred, target, *, hard_labels=False,
                     max_block_rows=_MAX_BLOCK_ROWS,
                     min_pallas_elements=_MIN_PALLAS_ELEMENTS,
                     use_pallas=None):
    """AdversarialLoss.forward: nn.BCELoss()(pred, target), mean reduction."""
    assert pred.shape == target.shape
    count = pred.size
    if count == 0:
        # torch BCELoss(reduction='mean') on empty input -> nan (0/0).
        return jnp.full((), jnp.nan, jnp.float32)

    if use_pallas is None:
        use_pallas = count >= min_pallas_elements
    if not use_pallas:
        return _bce_mean_reference(pred, target)

    max_block_rows = max(int(max_block_rows), _CHUNK_ROWS)
    scale = -1.0 / count   # fold the BCE negation into the mean scale

    flat_p = pred.reshape(-1)
    flat_t = target.reshape(-1)

    # Pad only to the next lane boundary (<=127 elems, only if misaligned).
    # Pad value 1.0 for BOTH streams => padded elements contribute exactly 0
    # to the clamped BCE sum (no mask stream needed).
    rows = pl.cdiv(count, _LANES)
    pad = rows * _LANES - count
    if pad:
        flat_p = jnp.concatenate([flat_p, jnp.full((pad,), 1.0, flat_p.dtype)])
        flat_t = jnp.concatenate([flat_t, jnp.full((pad,), 1.0, flat_t.dtype)])

    p2d = flat_p.reshape(rows, _LANES)
    t2d = flat_t.reshape(rows, _LANES)

    bytes_in = count * (jnp.dtype(pred.dtype).itemsize
                        + jnp.dtype(target.dtype).itemsize)
    cost = pl.CostEstimate(
        flops=(5 if hard_labels else 8) * count,
        transcendentals=(1 if hard_labels else 2) * count,
        bytes_accessed=bytes_in + 4,
    )

    if rows <= max_block_rows:
        # Small/medium: a single VMEM block, no grid.
        out = pl.pallas_call(
            _make_single_block_kernel(scale, hard_labels),
            out_shape=jax.ShapeDtypeStruct((1, 1), jnp.float32),
            compiler_params=pltpu.CompilerParams(
                vmem_limit_bytes=32 * 1024 * 1024),
            cost_estimate=cost,
        )(p2d, t2d)
        return out[0, 0]

    # Streaming path: big lane-dense blocks, partial tail block handled by
    # in-kernel row masking (no full-tensor padding copy).
    br = (max_block_rows // _CHUNK_ROWS) * _CHUNK_ROWS
    num_blocks = pl.cdiv(rows, br)
    tail_rows = rows - (num_blocks - 1) * br     # in (0, br]

    out = pl.pallas_call(
        _make_streaming_kernel(br, tail_rows, scale, hard_labels),
        out_shape=jax.ShapeDtypeStruct((1, 1), jnp.float32),
        grid_spec=pltpu.PrefetchScalarGridSpec(
            num_scalar_prefetch=0,
            grid=(num_blocks,),
            in_specs=[
                pl.BlockSpec((br, _LANES), lambda i: (i, 0)),
                pl.BlockSpec((br, _LANES), lambda i: (i, 0)),
            ],
            out_specs=pl.BlockSpec((1, 1), lambda i: (0, 0)),
            scratch_shapes=[pltpu.VMEM((_SUBLANES, _LANES), jnp.float32)],
        ),
        compiler_params=pltpu.CompilerParams(
            # Pure reduction axis; no leading core-split on 1-TC chips.
            dimension_semantics=("arbitrary",),
            vmem_limit_bytes=32 * 1024 * 1024,
        ),
        cost_estimate=cost,
    )(p2d, t2d)
    return out[0, 0]


if __name__ == "__main__":
    key = jax.random.PRNGKey(0)

    def make_inputs(k, shape):
        kp, kt = jax.random.split(k)
        pred = jax.nn.sigmoid(jax.random.normal(kp, shape, dtype=jnp.float32))
        target = (jax.random.uniform(kt, shape) > 0.5).astype(jnp.float32)
        return pred, target

    k1, k2, k3, key = jax.random.split(key, 4)
    checks = []

    # 1) Canonical small discriminator output (NCHW): single-block kernel path.
    pred, target = make_inputs(k1, (2, 4, 16, 16))
    loss = jax.block_until_ready(adversarial_loss(pred, target, use_pallas=True))
    checks.append((loss, _bce_mean_reference(pred, target)))

    # 2) Lane-ragged element count (exercises the <=127-element pad path).
    pred, target = make_inputs(k2, (3, 5, 7, 11))
    loss = jax.block_until_ready(adversarial_loss(pred, target, use_pallas=True))
    checks.append((loss, _bce_mean_reference(pred, target)))

    # 3) Multi-block streaming path with a partial tail block (row masking),
    #    plus the hard-label (single-log) fast path on the same data.
    pred, target = make_inputs(k3, (2, 4, 65, 64))   # 33280 elems -> 260 rows
    loss = jax.block_until_ready(
        adversarial_loss(pred, target, use_pallas=True, max_block_rows=128))
    checks.append((loss, _bce_mean_reference(pred, target)))
    loss_h = jax.block_until_ready(
        adversarial_loss(pred, target, use_pallas=True, hard_labels=True,
                         max_block_rows=128))
    checks.append((loss_h, _bce_mean_reference(pred, target)))

    for got, want in checks:
        assert jnp.allclose(got, want, rtol=1e-5, atol=1e-6), (got, want)

    print("KERNEL_OK")
</pallas_src>

<mosaic_0001>
module attributes {stable_mosaic.version = 11 : i64} {
  func.func @kernel(%arg0: memref<16x128xf32, #tpu.memory_space<vmem>>, %arg1: memref<16x128xf32, #tpu.memory_space<vmem>>, %arg2: memref<1x1xf32, #tpu.memory_space<vmem>>) attributes {dimension_semantics = [], scalar_prefetch = 0 : i64, scratch_operands = 0 : i64, tpu.core_type = #tpu.core_type<tc>} {
    %c0 = arith.constant 0 : index
    %c0_0 = arith.constant 0 : index
    %0 = vector.load %arg0[%c0, %c0_0] : memref<16x128xf32, #tpu.memory_space<vmem>>, vector<16x128xf32>
    %c0_1 = arith.constant 0 : index
    %c0_2 = arith.constant 0 : index
    %1 = vector.load %arg1[%c0_1, %c0_2] : memref<16x128xf32, #tpu.memory_space<vmem>>, vector<16x128xf32>
    %2 = math.log %0 : vector<16x128xf32>
    %cst = arith.constant -1.000000e+02 : f32
    %3 = vector.broadcast %cst : f32 to vector<16x128xf32>
    %4 = arith.maximumf %2, %3 : vector<16x128xf32>
    %cst_3 = arith.constant 0.000000e+00 : f32
    %5 = vector.broadcast %cst_3 : f32 to vector<16x128xf32>
    %6 = arith.subf %5, %0 : vector<16x128xf32>
    %7 = math.log1p %6 : vector<16x128xf32>
    %cst_4 = arith.constant -1.000000e+02 : f32
    %8 = vector.broadcast %cst_4 : f32 to vector<16x128xf32>
    %9 = arith.maximumf %7, %8 : vector<16x128xf32>
    %10 = arith.subf %4, %9 : vector<16x128xf32>
    %11 = arith.mulf %1, %10 : vector<16x128xf32>
    %12 = arith.addf %9, %11 : vector<16x128xf32>
    %13 = vector.shape_cast %12 : vector<16x128xf32> to vector<1x16x128xf32>
    %cst_5 = arith.constant dense<0.000000e+00> : vector<1xf32>
    %14 = vector.multi_reduction <add>, %13, %cst_5 [1, 2] : vector<1x16x128xf32> to vector<1xf32>
    %15 = vector.shape_cast %14 : vector<1xf32> to vector<1x1x1xf32>
    %16 = vector.extract %15[0, 0, 0] : f32 from vector<1x1x1xf32>
    %cst_6 = arith.constant -4.8828125E-4 : f32
    %17 = arith.mulf %16, %cst_6 : f32
    %18 = vector.broadcast %17 : f32 to vector<1x1xf32>
    %c0_7 = arith.constant 0 : index
    %c0_8 = arith.constant 0 : index
    %19 = vector.load %arg2[%c0_7, %c0_8] : memref<1x1xf32, #tpu.memory_space<vmem>>, vector<1x1xf32>
    tpu.vector_store %arg2[%c0_7, %c0_8], %18 {strides = array<i32>} : memref<1x1xf32, #tpu.memory_space<vmem>>, vector<1x1xf32>,
    return
  }
}

</mosaic_0001>

<llo_original>
// kernel: tpu_custom_call.1
$region0: #{tpu_custom_call.1}
  #allocation0 [shape = 'u32[]', space=smem, size = 0x4, offset = 0x4, fixed_abs, tag = 'smem constant byte address 0x4 - core index']
  #allocation1 [shape = 'u32[144,128]{1,0:T(1,128)}', space=vmem, size = 0x12000, scoped, tag = 'internal scratch']
  %s0 = inlined_call_operand.hbm [shape: f32[16,128], index: 0, kind: input, shape index: {}]
  %s1 = inlined_call_operand.hbm [shape: f32[16,128], index: 1, kind: input, shape index: {}]
  %s2 = inlined_call_operand.hbm [shape: f32[1,1], index: 2, kind: output, shape index: {}]
  %s3 = sld [smem:[#allocation0]]
  $region26: #{tpu_custom_call.1} parent=0
    _
  %s5 = ssub.s32 1, %s3
  %s6 = scalar_select 0, %s5, %s3
  $region1: #{tpu_custom_call.1} parent=0
    #allocation2 [shape = 'u8[8192]{0}', space=vmem, size = 0x2000, scoped, tag = 'input window, operand 0, single buffered']
    #allocation3 [shape = 's32[1]{0}', space=sflag, size = 0x4, scoped, tag = 'scoped memory for tpu_custom_call.1']
    #allocation4 [shape = 's32[1]{0}', space=sflag, size = 0x4, scoped, tag = 'scoped memory for tpu_custom_call.1']
    #allocation5 [shape = 'u8[8192]{0}', space=vmem, size = 0x2000, scoped, tag = 'input window, operand 1, single buffered']
    #allocation6 [shape = 's32[1]{0}', space=sflag, size = 0x4, scoped, tag = 'scoped memory for tpu_custom_call.1']
    #allocation7 [shape = 'u8[512]{0}', space=vmem, size = 0x400, scoped, tag = 'output window, operand 0, single buffered']
    %7 = vsyncpa [#allocation3], 0
    %8 = vsyncpa [#allocation6], 0
    %9 = vsyncpa [#allocation4], 0
    // Predicated region
    $region2: #{tpu_custom_call.1} parent=1 // pred_check
      _
    $region3: #{tpu_custom_call.1} parent=1 // pred_check_branch
      %11 = sbr.rel (0) target = $region5
    $region4: #{tpu_custom_call.1} parent=1 // pred_region
      %s13 = ssub.s32 256, 256
      %14 = vsyncadd [#allocation3], %s13
      %s15 = sshll.u32 [#allocation2], 4
      %s16 = int_to_ptr.vmem [resolvable:$true] %s15
      %21 = dma.hbm_to_vmem [thread:$0]  %s0, 256, %s16, [#allocation3], 128, 128, 8
    $region5: #{tpu_custom_call.1} parent=1 // pred_fallthru
      _
    // Predicated region
    $region6: #{tpu_custom_call.1} parent=1 // pred_check
      _
    $region7: #{tpu_custom_call.1} parent=1 // pred_check_branch
      %23 = sbr.rel (0) target = $region9
    $region8: #{tpu_custom_call.1} parent=1 // pred_region
      %s25 = ssub.s32 256, 256
      %26 = vsyncadd [#allocation6], %s25
      %s27 = sshll.u32 [#allocation5], 4
      %s28 = int_to_ptr.vmem [resolvable:$true] %s27
      %33 = dma.hbm_to_vmem [thread:$0]  %s1, 256, %s28, [#allocation6], 128, 128, 8
    $region9: #{tpu_custom_call.1} parent=1 // pred_fallthru
      _
    // Predicated region
    $region10: #{tpu_custom_call.1} parent=1 // pred_check
      _
    $region11: #{tpu_custom_call.1} parent=1 // pred_check_branch
      %35 = sbr.rel (0) target = $region13
    $region12: #{tpu_custom_call.1} parent=1 // pred_region
      %36 = dma.done [#allocation3], 256
    $region13: #{tpu_custom_call.1} parent=1 // pred_fallthru
      _
    // Predicated region
    $region14: #{tpu_custom_call.1} parent=1 // pred_check
      _
    $region15: #{tpu_custom_call.1} parent=1 // pred_check_branch
      %38 = sbr.rel (0) target = $region17
    $region16: #{tpu_custom_call.1} parent=1 // pred_region
      %39 = dma.done [#allocation6], 256
    $region17: #{tpu_custom_call.1} parent=1 // pred_fallthru
      _
    %v40 = vld [vmem:[#allocation2] sm:$0xff]
    %v41 = vld [vmem:[#allocation2 + $0x8] sm:$0xff]
    %v42 = vld [vmem:[#allocation5] sm:$0xff]
    %v43 = vld [vmem:[#allocation5 + $0x8] sm:$0xff]
    %v44 = vlog2.pop %v40
    %v45 = vmul.f32 %v44, 0.6931472
    %v46 = vlog2.pop %v41
    %v47 = vmul.f32 %v46, 0.6931472
    %v48 = vmax.f32 %v45, -100.0
    %v49 = vmax.f32 %v47, -100.0
    %v50 = vsub.f32 0.0, %v40
    %v51 = vsub.f32 0.0, %v41
    %v52 = vadd.f32 %v50, 1.0
    %v53 = vlog2.pop %v52
    %v54 = vmul.f32 %v53, 0.6931472
    %v55 = vmul.f32 -0.5, %v50
    %v56 = vadd.f32 %v55, 1.0
    %v57 = vmul.f32 %v56, %v50
    %v58 = vand.u32 2147483647, %v50
    %vm59 = vcmp.lt.f32.partialorder %v58, 0.0004427343
    %v60 = vsel %vm59, %v57, %v54
    %v61 = vadd.f32 %v51, 1.0
    %v62 = vlog2.pop %v61
    %v63 = vmul.f32 %v62, 0.6931472
    %v64 = vmul.f32 -0.5, %v51
    %v65 = vadd.f32 %v64, 1.0
    %v66 = vmul.f32 %v65, %v51
    %v67 = vand.u32 2147483647, %v51
    %vm68 = vcmp.lt.f32.partialorder %v67, 0.0004427343
    %v69 = vsel %vm68, %v66, %v63
    %v70 = vmax.f32 %v60, -100.0
    %v71 = vmax.f32 %v69, -100.0
    %v72 = vsub.f32 %v48, %v70
    %v73 = vsub.f32 %v49, %v71
    %v74 = vmul.f32 %v42, %v72
    %v75 = vmul.f32 %v43, %v73
    %v76 = vadd.f32 %v70, %v74
    %v77 = vadd.f32 %v71, %v75
    %v78 = vadd.f32 %v76, %v77
    %79 = vadd.xlane.f32.xlu0 %v78
    %v80 = vpop.xlane.xlu0 %79
    %v81 = vrot.slane %v80, 4
    %v82 = vadd.f32 %v80, %v81
    %v83 = vrot.slane %v82, 2
    %v84 = vadd.f32 %v82, %v83
    %v85 = vrot.slane %v84, 1
    %v86 = vadd.f32 %v84, %v85
    %s87 = vtos %v86
    %s88 = smul.f32 %s87, -0.00048828125
    %v89 = vstv %s88
    %vm90 = vcmask 0
    %91 = vst.msk [vmem:[#allocation7] sm:$0x1] %vm90, %v89
    // Predicated region
    $region18: #{tpu_custom_call.1} parent=1 // pred_check
      _
    $region19: #{tpu_custom_call.1} parent=1 // pred_check_branch
      %93 = sbr.rel (0) target = $region21
    $region20: #{tpu_custom_call.1} parent=1 // pred_region
      %s95 = ssub.s32 16, 16
      %96 = vsyncadd [#allocation4], %s95
      %s98 = sshll.u32 [#allocation7], 4
      %s99 = int_to_ptr.vmem [resolvable:$true] %s98
      %101 = dma.vmem_to_hbm [thread:$0]  %s99, 16, %s2, [#allocation4]
    $region21: #{tpu_custom_call.1} parent=1 // pred_fallthru
      _
    // Predicated region
    $region22: #{tpu_custom_call.1} parent=1 // pred_check
      _
    $region23: #{tpu_custom_call.1} parent=1 // pred_check_branch
      %103 = sbr.rel (0) target = $region25
    $region24: #{tpu_custom_call.1} parent=1 // pred_region
      %104 = dma.done [#allocation4], 16
    $region25: #{tpu_custom_call.1} parent=1 // pred_fallthru
      _
    %105 = vsyncpa [#allocation3], 1
    %106 = vsyncpa [#allocation6], 1
    %107 = vsyncpa [#allocation4], 1

</llo_original>
